<compile_context>
chip_gen: v5e
topology: v5e:2x2
jax: 0.10.0
libtpu: 0.0.40
codegen_flags: <defaults>
</compile_context>

<pallas_src>
import jax
import jax.numpy as jnp
from jax.experimental import pallas as pl
from jax.experimental.pallas import tpu as pltpu


def linear_encoder_pallas(x_stacked, w_stacked, b_stacked, B, C, M, N):
    """x_stacked: (2, B*C, M, N); w_stacked: (2, N, N) in (in,out) layout;
    b_stacked: (2, 1, N).  Returns (2, B, M, N)."""

    inv_c = 1.0 / C  # compile-time reciprocal (no divide in-kernel)

    def kernel(x_ref, w_ref, b_ref, o_ref):
        # x_ref block: (1, B*C, M, N) for one path p in {series, prior}
        xp = x_ref[0]                         # (B*C, M, N)
        # einops '(b c)': b outer, c inner -> split leading dim (layout no-op)
        x4 = xp.reshape(B, C, M, N)
        # Channel mean on the VPU (unrolled static adds), hoisted before the
        # matmul by linearity of the affine layer.
        acc = x4[:, 0]
        for c in range(1, C):
            acc = acc + x4[:, c]
        xm = acc * inv_c                      # (B, M, N)
        # One matmul per path with a taller LHS (B*M rows) for MXU fill.
        lhs = xm.reshape(B * M, N)
        y = jnp.dot(lhs, w_ref[0], preferred_element_type=jnp.float32)
        y = y + b_ref[0]                      # (B*M, N) + (1, N), added once
        o_ref[0] = y.reshape(B, M, N).astype(o_ref.dtype)

    return pl.pallas_call(
        kernel,
        out_shape=jax.ShapeDtypeStruct((2, B, M, N), x_stacked.dtype),
        grid_spec=pltpu.PrefetchScalarGridSpec(
            num_scalar_prefetch=0,
            grid=(2,),  # one step per path; parallel -> one per TC on v7x
            in_specs=[
                pl.BlockSpec((1, B * C, M, N), lambda p: (p, 0, 0, 0)),
                pl.BlockSpec((1, N, N), lambda p: (p, 0, 0)),
                pl.BlockSpec((1, 1, N), lambda p: (p, 0, 0)),
            ],
            out_specs=pl.BlockSpec((1, B, M, N), lambda p: (p, 0, 0, 0)),
        ),
        compiler_params=pltpu.CompilerParams(
            dimension_semantics=("parallel",),
        ),
    )(x_stacked, w_stacked, b_stacked)


def linear_encoder_forward(x_patch_size, x_patch_num, params, channel,
                           x_ori=None, attn_mask=None):
    """Mirrors Linear_Encoder.forward (x_ori / attn_mask are unused upstream).

    x_patch_size, x_patch_num: (B*C, M, d_model)
    params: dict with patch_w/point_w stored as (in, out) and patch_b/point_b (d_model,)
    returns (series, prior), each (B, M, d_model)
    """
    BC, M, N = x_patch_size.shape
    assert BC % channel == 0
    B = BC // channel
    C = channel

    # Fuse both paths into one kernel launch.
    x_stacked = jnp.stack([x_patch_size, x_patch_num], axis=0)            # (2, B*C, M, N)
    w_stacked = jnp.stack([params["patch_w"], params["point_w"]], axis=0)  # (2, N, N)
    b_stacked = jnp.stack([params["patch_b"], params["point_b"]], axis=0).reshape(2, 1, N)

    out = linear_encoder_pallas(x_stacked, w_stacked, b_stacked, B, C, M, N)
    return out[0], out[1]


def init_params(key, d_model):
    """nn.Linear-equivalent init (uniform +-1/sqrt(d_model)).

    Weights are stored pre-transposed in (in, out) layout once at init, so the
    forward pass never pays an XLA transpose (y = x @ W_io + b)."""
    k1, k2, k3, k4 = jax.random.split(key, 4)
    bound = 1.0 / jnp.sqrt(d_model)
    return {
        "patch_w": jax.random.uniform(k1, (d_model, d_model), jnp.float32, -bound, bound),
        "patch_b": jax.random.uniform(k2, (d_model,), jnp.float32, -bound, bound),
        "point_w": jax.random.uniform(k3, (d_model, d_model), jnp.float32, -bound, bound),
        "point_b": jax.random.uniform(k4, (d_model,), jnp.float32, -bound, bound),
    }


if __name__ == "__main__":
    # Small shapes consistent with the module:
    #   batch B=2, channel C=4, patches M=8, d_model N=32
    B, C, M, d_model = 2, 4, 8, 32

    key = jax.random.PRNGKey(0)
    kp, kx1, kx2 = jax.random.split(key, 3)
    params = init_params(kp, d_model)

    x_patch_size = jax.random.normal(kx1, (B * C, M, d_model), jnp.float32)
    x_patch_num = jax.random.normal(kx2, (B * C, M, d_model), jnp.float32)

    series, prior = linear_encoder_forward(x_patch_size, x_patch_num, params, channel=C)
    series = jax.block_until_ready(series)
    prior = jax.block_until_ready(prior)

    # Pure-JAX reference (matmul-then-mean order, as in the PyTorch module).
    def ref(x, w_io, b):
        y = x @ w_io + b                       # (B*C, M, N); weight is (in, out)
        return y.reshape(B, C, M, d_model).mean(axis=1)

    ref_series = ref(x_patch_size, params["patch_w"], params["patch_b"])
    ref_prior = ref(x_patch_num, params["point_w"], params["point_b"])

    assert series.shape == (B, M, d_model) and prior.shape == (B, M, d_model)
    assert jnp.allclose(series, ref_series, atol=1e-5, rtol=1e-5)
    assert jnp.allclose(prior, ref_prior, atol=1e-5, rtol=1e-5)

    print("KERNEL_OK")
</pallas_src>

<mosaic_0001>
module attributes {stable_mosaic.version = 11 : i64} {
  func.func @kernel(%arg0: i32, %arg1: memref<1x8x8x32xf32, #tpu.memory_space<vmem>>, %arg2: memref<1x32x32xf32, #tpu.memory_space<vmem>>, %arg3: memref<1x1x32xf32, #tpu.memory_space<vmem>>, %arg4: memref<1x2x8x32xf32, #tpu.memory_space<vmem>>) attributes {dimension_semantics = [#tpu.dimension_semantics<parallel>], iteration_bounds = array<i64: 2>, scalar_prefetch = 0 : i64, scratch_operands = 0 : i64, tpu.core_type = #tpu.core_type<tc>, window_params = [{transform_indices = @transform_0, window_bounds = array<i64: 1, 8, 8, 32>}, {transform_indices = @transform_1, window_bounds = array<i64: 1, 32, 32>}, {transform_indices = @transform_2, window_bounds = array<i64: 1, 1, 32>}, {transform_indices = @transform_3, window_bounds = array<i64: 1, 2, 8, 32>}]} {
    %c0 = arith.constant 0 : index
    %c0_0 = arith.constant 0 : index
    %c0_1 = arith.constant 0 : index
    %c0_2 = arith.constant 0 : index
    %0 = vector.load %arg1[%c0, %c0_0, %c0_1, %c0_2] : memref<1x8x8x32xf32, #tpu.memory_space<vmem>>, vector<1x8x8x32xf32>
    %1 = vector.shape_cast %0 : vector<1x8x8x32xf32> to vector<8x8x32xf32>
    %2 = vector.shape_cast %1 : vector<8x8x32xf32> to vector<2x4x8x32xf32>
    %3 = vector.extract_strided_slice %2 {offsets = [0, 0, 0, 0], sizes = [2, 1, 8, 32], strides = [1, 1, 1, 1]} : vector<2x4x8x32xf32> to vector<2x1x8x32xf32>
    %4 = vector.shape_cast %3 : vector<2x1x8x32xf32> to vector<2x8x32xf32>
    %5 = vector.extract_strided_slice %2 {offsets = [0, 1, 0, 0], sizes = [2, 1, 8, 32], strides = [1, 1, 1, 1]} : vector<2x4x8x32xf32> to vector<2x1x8x32xf32>
    %6 = vector.shape_cast %5 : vector<2x1x8x32xf32> to vector<2x8x32xf32>
    %7 = arith.addf %4, %6 : vector<2x8x32xf32>
    %8 = vector.extract_strided_slice %2 {offsets = [0, 2, 0, 0], sizes = [2, 1, 8, 32], strides = [1, 1, 1, 1]} : vector<2x4x8x32xf32> to vector<2x1x8x32xf32>
    %9 = vector.shape_cast %8 : vector<2x1x8x32xf32> to vector<2x8x32xf32>
    %10 = arith.addf %7, %9 : vector<2x8x32xf32>
    %11 = vector.extract_strided_slice %2 {offsets = [0, 3, 0, 0], sizes = [2, 1, 8, 32], strides = [1, 1, 1, 1]} : vector<2x4x8x32xf32> to vector<2x1x8x32xf32>
    %12 = vector.shape_cast %11 : vector<2x1x8x32xf32> to vector<2x8x32xf32>
    %13 = arith.addf %10, %12 : vector<2x8x32xf32>
    %cst = arith.constant 2.500000e-01 : f32
    %14 = vector.broadcast %cst : f32 to vector<2x8x32xf32>
    %15 = arith.mulf %13, %14 : vector<2x8x32xf32>
    %16 = vector.shape_cast %15 : vector<2x8x32xf32> to vector<16x32xf32>
    %c0_3 = arith.constant 0 : index
    %c0_4 = arith.constant 0 : index
    %c0_5 = arith.constant 0 : index
    %17 = vector.load %arg2[%c0_3, %c0_4, %c0_5] : memref<1x32x32xf32, #tpu.memory_space<vmem>>, vector<1x32x32xf32>
    %18 = vector.shape_cast %17 : vector<1x32x32xf32> to vector<32x32xf32>
    %cst_6 = arith.constant dense<0.000000e+00> : vector<16x32xf32>
    %19 = tpu.matmul %16, %18, %cst_6 {dimension_numbers = #tpu.dot_dimension_numbers<[1], [0], [0], [1], [0, 0, 1, 1], [], []>} : vector<16x32xf32>, vector<32x32xf32>, vector<16x32xf32> -> vector<16x32xf32>
    %c0_7 = arith.constant 0 : index
    %c0_8 = arith.constant 0 : index
    %c0_9 = arith.constant 0 : index
    %20 = vector.load %arg3[%c0_7, %c0_8, %c0_9] : memref<1x1x32xf32, #tpu.memory_space<vmem>>, vector<1x1x32xf32>
    %21 = vector.shape_cast %20 : vector<1x1x32xf32> to vector<1x32xf32>
    %22 = vector.broadcast %21 : vector<1x32xf32> to vector<16x32xf32>
    %23 = arith.addf %19, %22 : vector<16x32xf32>
    %24 = vector.shape_cast %23 : vector<16x32xf32> to vector<2x8x32xf32>
    %c0_10 = arith.constant 0 : index
    %c0_11 = arith.constant 0 : index
    %c0_12 = arith.constant 0 : index
    %c0_13 = arith.constant 0 : index
    %25 = vector.load %arg4[%c0_10, %c0_11, %c0_12, %c0_13] : memref<1x2x8x32xf32, #tpu.memory_space<vmem>>, vector<1x2x8x32xf32>
    %26 = vector.shape_cast %25 : vector<1x2x8x32xf32> to vector<2x8x32xf32>
    %27 = vector.shape_cast %24 : vector<2x8x32xf32> to vector<1x2x8x32xf32>
    tpu.vector_store %arg4[%c0_10, %c0_11, %c0_12, %c0_13], %27 {strides = array<i32>} : memref<1x2x8x32xf32, #tpu.memory_space<vmem>>, vector<1x2x8x32xf32>,
    return
  }
  func.func @transform_0(%arg0: i32) -> (i32, i32, i32, i32) {
    %c0_i32 = arith.constant 0 : i32
    %c0_i32_0 = arith.constant 0 : i32
    %c0_i32_1 = arith.constant 0 : i32
    %c0_i32_2 = arith.constant 0 : i32
    return %arg0, %c0_i32, %c0_i32_0, %c0_i32_1 : i32, i32, i32, i32
  }
  func.func @transform_1(%arg0: i32) -> (i32, i32, i32) {
    %c0_i32 = arith.constant 0 : i32
    %c0_i32_0 = arith.constant 0 : i32
    %c0_i32_1 = arith.constant 0 : i32
    return %arg0, %c0_i32, %c0_i32_0 : i32, i32, i32
  }
  func.func @transform_2(%arg0: i32) -> (i32, i32, i32) {
    %c0_i32 = arith.constant 0 : i32
    %c0_i32_0 = arith.constant 0 : i32
    %c0_i32_1 = arith.constant 0 : i32
    return %arg0, %c0_i32, %c0_i32_0 : i32, i32, i32
  }
  func.func @transform_3(%arg0: i32) -> (i32, i32, i32, i32) {
    %c0_i32 = arith.constant 0 : i32
    %c0_i32_0 = arith.constant 0 : i32
    %c0_i32_1 = arith.constant 0 : i32
    %c0_i32_2 = arith.constant 0 : i32
    return %arg0, %c0_i32, %c0_i32_0, %c0_i32_1 : i32, i32, i32, i32
  }
}

</mosaic_0001>

<llo_original>
// kernel: tpu_custom_call.1
$region0: #{tpu_custom_call.1}
  #allocation0 [shape = 'u32[]', space=smem, size = 0x4, offset = 0x4, fixed_abs, tag = 'smem constant byte address 0x4 - core index']
  #allocation1 [shape = 'u32[72,128]{1,0:T(1,128)}', space=vmem, size = 0x9000, scoped, tag = 'internal scratch']
  %s0 = inlined_call_operand.hbm [shape: f32[2,8,8,32], index: 0, kind: input, shape index: {}]
  %s1 = inlined_call_operand.hbm [shape: f32[2,32,32], index: 1, kind: input, shape index: {}]
  %s2 = inlined_call_operand.hbm [shape: f32[2,1,32], index: 2, kind: input, shape index: {}]
  %s3 = inlined_call_operand.hbm [shape: f32[2,2,8,32], index: 3, kind: output, shape index: {}]
  %s4 = sld [smem:[#allocation0]]
  $region57: #{tpu_custom_call.1} parent=0
    _
  %s6 = ssub.s32 1, %s4
  %s7 = scalar_select 0, %s6, %s4
  $region1: #{tpu_custom_call.1} parent=0
    #allocation2 [shape = 'u8[65536]{0}', space=vmem, size = 0x10000, scoped, tag = 'input window, operand 0']
    #allocation3 [shape = 's32[2]{0}', space=sflag, size = 0x8, scoped, tag = 'scoped memory for tpu_custom_call.1']
    #allocation4 [shape = 's32[2]{0}', space=sflag, size = 0x8, scoped, tag = 'scoped memory for tpu_custom_call.1']
    #allocation5 [shape = 'u8[32768]{0}', space=vmem, size = 0x8000, scoped, tag = 'input window, operand 1']
    #allocation6 [shape = 's32[2]{0}', space=sflag, size = 0x8, scoped, tag = 'scoped memory for tpu_custom_call.1']
    #allocation7 [shape = 'u8[1024]{0}', space=vmem, size = 0x400, scoped, tag = 'input window, operand 2']
    #allocation8 [shape = 'u8[16384]{0}', space=vmem, size = 0x4000, scoped, tag = 'output window, operand 0']
    %8 = vsyncpa [#allocation3], 0
    %s9 = scalar_lea.sflag [#allocation3], 1
    %10 = vsyncpa %s9, 0
    %11 = vsyncpa [#allocation6], 0
    %s12 = scalar_lea.sflag [#allocation6], 1
    %13 = vsyncpa %s12, 0
    %14 = vsyncpa [#allocation4], 0
    %s15 = scalar_lea.sflag [#allocation4], 1
    %16 = vsyncpa %s15, 0
    loop: start=0, step=1, limit=4
    $region2: #{tpu_custom_call.1} parent=1 // loop_pre_header
      _
    $region3: #{tpu_custom_call.1} parent=1 // loop_header
      %s18 = sphi 0, %s22
      %p19 = scmp.ge.s32.totalorder %s18, 4
      %s28 = sphi 0, %s30
      %s31 = sphi 0, %s28
      %s32 = sphi 0, %s31
      %s48 = sphi 0, %s32
      %s54 = sphi 0, %s56
      %s57 = sphi 0, %s54
      %s58 = sphi 0, %s57
      %s74 = sphi 0, %s58
      %s80 = sphi 0, %s82
      %s83 = sphi 0, %s80
      %s84 = sphi 0, %s83
      %s100 = sphi 0, %s84
      %s106 = sphi 0, %s108
      %s109 = sphi 0, %s106
      %s110 = sphi 0, %s109
      %s126 = sphi 0, %s110
    $region4: #{tpu_custom_call.1} parent=1 // loop_header_branch
      %21 = sbr.rel (%p19) target = $region8
    $region5: #{tpu_custom_call.1} parent=1 // loop_body
      %s23 = ssub.s32 %s18, 1
      %s24 = ssub.s32 %s18, 2
      %s25 = sadd.s32 %s18, 1
      %s26 = ssub.s32 %s18, %s25
      %p27 = scmp.eq.s32.totalorder %s26, 0
      %s29 = sadd.s32 %s28, 1
      %s30 = scalar_select %p27, %s28, %s29
      %p33 = pneg %p27
      %p34 = scmp.eq.s32.totalorder %s18, 1
      %p35 = por %p33, %p34
      %p36 = scmp.ne.s32.totalorder %s28, %s31
      %p37 = scmp.eq.s32.totalorder %s18, 0
      %p38 = por %p36, %p37
      %p39 = scmp.ne.s32.totalorder %s28, %s31
      %p40 = scmp.eq.s32.totalorder %s23, 1
      %p41 = por %p39, %p40
      %p42 = scmp.ne.s32.totalorder %s31, %s32
      %p43 = scmp.eq.s32.totalorder %s23, 0
      %p44 = por %p42, %p43
      %p45 = scmp.ne.s32.totalorder %s31, %s32
      %p46 = scmp.eq.s32.totalorder %s24, 1
      %p47 = por %p45, %p46
      %p49 = scmp.ne.s32.totalorder %s32, %s48
      %p50 = scmp.eq.s32.totalorder %s24, 0
      %p51 = por %p49, %p50
      %s52 = ssub.s32 %s18, %s25
      %p53 = scmp.eq.s32.totalorder %s52, 0
      %s55 = sadd.s32 %s54, 1
      %s56 = scalar_select %p53, %s54, %s55
      %p59 = pneg %p53
      %p60 = scmp.eq.s32.totalorder %s18, 1
      %p61 = por %p59, %p60
      %p62 = scmp.ne.s32.totalorder %s54, %s57
      %p63 = scmp.eq.s32.totalorder %s18, 0
      %p64 = por %p62, %p63
      %p65 = scmp.ne.s32.totalorder %s54, %s57
      %p66 = scmp.eq.s32.totalorder %s23, 1
      %p67 = por %p65, %p66
      %p68 = scmp.ne.s32.totalorder %s57, %s58
      %p69 = scmp.eq.s32.totalorder %s23, 0
      %p70 = por %p68, %p69
      %p71 = scmp.ne.s32.totalorder %s57, %s58
      %p72 = scmp.eq.s32.totalorder %s24, 1
      %p73 = por %p71, %p72
      %p75 = scmp.ne.s32.totalorder %s58, %s74
      %p76 = scmp.eq.s32.totalorder %s24, 0
      %p77 = por %p75, %p76
      %s78 = ssub.s32 %s18, %s25
      %p79 = scmp.eq.s32.totalorder %s78, 0
      %s81 = sadd.s32 %s80, 1
      %s82 = scalar_select %p79, %s80, %s81
      %p85 = pneg %p79
      %p86 = scmp.eq.s32.totalorder %s18, 1
      %p87 = por %p85, %p86
      %p88 = scmp.ne.s32.totalorder %s80, %s83
      %p89 = scmp.eq.s32.totalorder %s18, 0
      %p90 = por %p88, %p89
      %p91 = scmp.ne.s32.totalorder %s80, %s83
      %p92 = scmp.eq.s32.totalorder %s23, 1
      %p93 = por %p91, %p92
      %p94 = scmp.ne.s32.totalorder %s83, %s84
      %p95 = scmp.eq.s32.totalorder %s23, 0
      %p96 = por %p94, %p95
      %p97 = scmp.ne.s32.totalorder %s83, %s84
      %p98 = scmp.eq.s32.totalorder %s24, 1
      %p99 = por %p97, %p98
      %p101 = scmp.ne.s32.totalorder %s84, %s100
      %p102 = scmp.eq.s32.totalorder %s24, 0
      %p103 = por %p101, %p102
      %s104 = ssub.s32 %s18, %s25
      %p105 = scmp.eq.s32.totalorder %s104, 0
      %s107 = sadd.s32 %s106, 1
      %s108 = scalar_select %p105, %s106, %s107
      %p111 = pneg %p105
      %p112 = scmp.eq.s32.totalorder %s18, 1
      %p113 = por %p111, %p112
      %p114 = scmp.ne.s32.totalorder %s106, %s109
      %p115 = scmp.eq.s32.totalorder %s18, 0
      %p116 = por %p114, %p115
      %p117 = scmp.ne.s32.totalorder %s106, %s109
      %p118 = scmp.eq.s32.totalorder %s23, 1
      %p119 = por %p117, %p118
      %p120 = scmp.ne.s32.totalorder %s109, %s110
      %p121 = scmp.eq.s32.totalorder %s23, 0
      %p122 = por %p120, %p121
      %p123 = scmp.ne.s32.totalorder %s109, %s110
      %p124 = scmp.eq.s32.totalorder %s24, 1
      %p125 = por %p123, %p124
      %p127 = scmp.ne.s32.totalorder %s110, %s126
      %p128 = scmp.eq.s32.totalorder %s24, 0
      %p129 = por %p127, %p128
      %p130 = scmp.le.s32.totalorder 1, %s18
      %p131 = scmp.lt.s32.totalorder %s18, 3
      %p132 = pnand %p130, %p131
      %p133 = pneg %p132
      // Predicated region
      $region9: #{tpu_custom_call.1} parent=5 // pred_check
        _
      $region10: #{tpu_custom_call.1} parent=5 // pred_check_branch
        %135 = sbr.rel (%p132) target = $region12
      $region11: #{tpu_custom_call.1} parent=5 // pred_region
        %s136 = ssub.s32 %s18, 1
      $region12: #{tpu_custom_call.1} parent=5 // pred_fallthru
        _
      %p137 = scmp.lt.s32.totalorder %s18, 2
      // Predicated region
      $region13: #{tpu_custom_call.1} parent=5 // pred_check
        %p138 = pneg %p137
      $region14: #{tpu_custom_call.1} parent=5 // pred_check_branch
        %140 = sbr.rel (%p138) target = $region16
      $region15: #{tpu_custom_call.1} parent=5 // pred_region
        // Predicated region
        $region17: #{tpu_custom_call.1} parent=15 // pred_check
          %p141 = pneg %p38
        $region18: #{tpu_custom_call.1} parent=15 // pred_check_branch
          %143 = sbr.rel (%p141) target = $region20
        $region19: #{tpu_custom_call.1} parent=15 // pred_region
          %s144 = sand.u32 %s28, 1
          %s145 = scalar_lea.sflag [#allocation3], %s144
          %s146 = sand.u32 %s28, 1
          %s147 = smul.addr %s146, 64
          %s148 = scalar_lea.vmem [#allocation2], %s147
          %150 = vsyncadd %s145, 0
          %s151 = smul.addr %s18, 8
          %s152 = smul.addr %s151, 8
          %s153 = scalar_lea.hbm %s0, %s152
          %s154 = sshll.u32 %s153, 4
          %s155 = int_to_ptr.hbm [resolvable:$true] %s154
          %s156 = sshll.u32 %s148, 4
          %s157 = int_to_ptr.vmem [resolvable:$true] %s156
          %162 = dma.hbm_to_vmem [thread:$0]  %s155, 1024, %s157, %s145, 128, 128, 8
        $region20: #{tpu_custom_call.1} parent=15 // pred_fallthru
          _
        // Predicated region
        $region21: #{tpu_custom_call.1} parent=15 // pred_check
          %p163 = pneg %p64
        $region22: #{tpu_custom_call.1} parent=15 // pred_check_branch
          %165 = sbr.rel (%p163) target = $region24
        $region23: #{tpu_custom_call.1} parent=15 // pred_region
          %s166 = sand.u32 %s18, 1
          %s167 = scalar_lea.sflag [#allocation6], %s166
          %s168 = sand.u32 %s54, 1
          %s169 = smul.addr %s168, 32
          %s170 = scalar_lea.vmem [#allocation5], %s169
          %172 = vsyncadd %s167, 0
          %s173 = smul.addr %s18, 4
          %s174 = smul.addr %s173, 8
          %s175 = scalar_lea.hbm %s1, %s174
          %s176 = sshll.u32 %s175, 4
          %s177 = int_to_ptr.hbm [resolvable:$true] %s176
          %s178 = sshll.u32 %s170, 4
          %s179 = int_to_ptr.vmem [resolvable:$true] %s178
          %184 = dma.hbm_to_vmem [thread:$0]  %s177, 512, %s179, %s167, 128, 128, 8
        $region24: #{tpu_custom_call.1} parent=15 // pred_fallthru
          _
        // Predicated region
        $region25: #{tpu_custom_call.1} parent=15 // pred_check
          %p185 = pneg %p90
        $region26: #{tpu_custom_call.1} parent=15 // pred_check_branch
          %187 = sbr.rel (%p185) target = $region28
        $region27: #{tpu_custom_call.1} parent=15 // pred_region
          %s188 = sand.u32 %s18, 1
          %s189 = scalar_lea.sflag [#allocation6], %s188
          %s190 = sand.u32 %s80, 1
          %s191 = scalar_lea.vmem [#allocation7], %s190
          %193 = vsyncadd %s189, 0
          %s194 = scalar_lea.hbm %s2, %s18
          %s196 = sshll.u32 %s194, 4
          %s197 = int_to_ptr.hbm [resolvable:$true] %s196
          %s198 = sshll.u32 %s191, 4
          %s199 = int_to_ptr.vmem [resolvable:$true] %s198
          %201 = dma.hbm_to_vmem [thread:$0]  %s197, 16, %s199, %s189
        $region28: #{tpu_custom_call.1} parent=15 // pred_fallthru
          _
      $region16: #{tpu_custom_call.1} parent=5 // pred_fallthru
        _
      %p202 = scmp.le.s32.totalorder 1, %s18
      %p203 = scmp.lt.s32.totalorder %s18, 3
      %p204 = pnand %p202, %p203
      %p205 = pneg %p204
      // Predicated region
      $region29: #{tpu_custom_call.1} parent=5 // pred_check
        _
      $region30: #{tpu_custom_call.1} parent=5 // pred_check_branch
        %207 = sbr.rel (%p204) target = $region32
      $region31: #{tpu_custom_call.1} parent=5 // pred_region
        %s208 = ssub.s32 %s18, 1
        %s209 = sand.u32 %s31, 1
        %s210 = scalar_lea.sflag [#allocation3], %s209
        %s211 = sand.u32 %s31, 1
        %s212 = smul.addr %s211, 64
        %s213 = scalar_lea.vmem [#allocation2], %s212
        // Predicated region
        $region33: #{tpu_custom_call.1} parent=31 // pred_check
          %p214 = pneg %p44
        $region34: #{tpu_custom_call.1} parent=31 // pred_check_branch
          %216 = sbr.rel (%p214) target = $region36
        $region35: #{tpu_custom_call.1} parent=31 // pred_region
          %218 = dma.done %s210, 1024
        $region36: #{tpu_custom_call.1} parent=31 // pred_fallthru
          _
        %s219 = sand.u32 %s23, 1
        %s220 = scalar_lea.sflag [#allocation6], %s219
        %s221 = sand.u32 %s57, 1
        %s222 = smul.addr %s221, 32
        %s223 = scalar_lea.vmem [#allocation5], %s222
        // Predicated region
        $region37: #{tpu_custom_call.1} parent=31 // pred_check
          %p224 = pneg %p70
        $region38: #{tpu_custom_call.1} parent=31 // pred_check_branch
          %226 = sbr.rel (%p224) target = $region40
        $region39: #{tpu_custom_call.1} parent=31 // pred_region
          %228 = dma.done %s220, 512
        $region40: #{tpu_custom_call.1} parent=31 // pred_fallthru
          _
        %s229 = sand.u32 %s23, 1
        %s230 = scalar_lea.sflag [#allocation6], %s229
        %s231 = sand.u32 %s83, 1
        %s232 = scalar_lea.vmem [#allocation7], %s231
        // Predicated region
        $region41: #{tpu_custom_call.1} parent=31 // pred_check
          %p233 = pneg %p96
        $region42: #{tpu_custom_call.1} parent=31 // pred_check_branch
          %235 = sbr.rel (%p233) target = $region44
        $region43: #{tpu_custom_call.1} parent=31 // pred_region
          %237 = dma.done %s230, 16
        $region44: #{tpu_custom_call.1} parent=31 // pred_fallthru
          _
        %s238 = sand.u32 %s31, 1
        %s239 = scalar_lea.sflag [#allocation3], %s238
        %s240 = sand.u32 %s31, 1
        %s241 = smul.addr %s240, 64
        %s242 = scalar_lea.vmem [#allocation2], %s241
        %p243 = pneg %p44
        %p244 = pneg %p41
        %s245 = sand.u32 %s23, 1
        %s246 = scalar_lea.sflag [#allocation6], %s245
        %s247 = sand.u32 %s57, 1
        %s248 = smul.addr %s247, 32
        %s249 = scalar_lea.vmem [#allocation5], %s248
        %p250 = pneg %p70
        %p251 = pneg %p67
        %s252 = sand.u32 %s23, 1
        %s253 = scalar_lea.sflag [#allocation6], %s252
        %s254 = sand.u32 %s83, 1
        %s255 = scalar_lea.vmem [#allocation7], %s254
        %p256 = pneg %p96
        %p257 = pneg %p93
        %p258 = pneg %p122
        %p259 = pneg %p119
        %s260 = sand.u32 %s109, 1
        %s261 = scalar_lea.sflag [#allocation4], %s260
        %s262 = sand.u32 %s109, 1
        %s263 = smul.addr %s262, 16
        %s264 = scalar_lea.vmem [#allocation8], %s263
        %v265 = vld [vmem:[%s213] sm:$0xff]
        %v266 = vld [vmem:[%s213 + $0x8] sm:$0xff]
        %v267 = vld [vmem:[%s213 + $0x10] sm:$0xff]
        %v268 = vld [vmem:[%s213 + $0x18] sm:$0xff]
        %v269 = vld [vmem:[%s213 + $0x20] sm:$0xff]
        %v270 = vld [vmem:[%s213 + $0x28] sm:$0xff]
        %v271 = vld [vmem:[%s213 + $0x30] sm:$0xff]
        %v272 = vld [vmem:[%s213 + $0x38] sm:$0xff]
        %v273 = vadd.f32 %v265, %v266
        %v274 = vadd.f32 %v269, %v270
        %v275 = vadd.f32 %v273, %v267
        %v276 = vadd.f32 %v274, %v271
        %v277 = vadd.f32 %v275, %v268
        %v278 = vadd.f32 %v276, %v272
        %v279 = vmul.f32 %v277, 0.25
        %v280 = vmul.f32 %v278, 0.25
        %v281 = vld [vmem:[%s223] sm:$0xff]
        %v282 = vld [vmem:[%s223 + $0x8] sm:$0xff]
        %v283 = vld [vmem:[%s223 + $0x10] sm:$0xff]
        %v284 = vld [vmem:[%s223 + $0x18] sm:$0xff]
        %v285 = vld [vmem:[%s232] sm:$0x1]
        %v287 = vperm.slane %v285, 0
        %vm289 = vcmask 261120
        %v291 = vsel %vm289, %v279, 0
        %v294 = vsel %vm289, %v280, 0
        %296 = vmatpush.msra.mxu0 0.0
        %297 = vmatpush.msra.mxu0 0.0
        %298 = vmatpush.msra.mxu0 0.0
        %299 = vmatpush.msra.mxu0 0.0
        %300 = vmatpush.msra.mxu0 0.0
        %301 = vmatpush.msra.mxu0 0.0
        %302 = vmatpush.msra.mxu0 0.0
        %303 = vmatpush.msra.mxu0 0.0
        %304 = vmatpush.msra.mxu0 0.0
        %305 = vmatpush.msra.mxu0 0.0
        %306 = vmatpush.msra.mxu0 0.0
        %307 = vmatpush.msra.mxu0 0.0
        %308 = vmatpush.msra.mxu0 %v284
        %309 = vmatpush.msra.mxu0 %v283
        %310 = vmatpush.msra.mxu0 %v282
        %311 = vmatpush.msra.mxu0 %v281
        %312 = vmatmul.f32.gmra.mxu0 %v291
        %v313 = vpop.f32.mrf.mxu0
        %v314 = vadd.f32 %v287, %v313
        %315 = vmatmul.f32.gmra.mxu0 %v294
        %v316 = vpop.f32.mrf.mxu0
        %v317 = vadd.f32 %v287, %v316
        %318 = vdwg.mxu0
        %319 = vst.msk [vmem:[%s264] sm:$0xff] %vm289, %v314
        %320 = vst.msk [vmem:[%s264 + $0x8] sm:$0xff] %vm289, %v317
        %s321 = sand.u32 %s109, 1
        %s322 = scalar_lea.sflag [#allocation4], %s321
        %s323 = sand.u32 %s109, 1
        %s324 = smul.addr %s323, 16
        %s325 = scalar_lea.vmem [#allocation8], %s324
        // Predicated region
        $region45: #{tpu_custom_call.1} parent=31 // pred_check
          %p326 = pneg %p119
        $region46: #{tpu_custom_call.1} parent=31 // pred_check_branch
          %328 = sbr.rel (%p326) target = $region48
        $region47: #{tpu_custom_call.1} parent=31 // pred_region
          %330 = vsyncadd %s322, 0
          %s331 = smul.addr %s23, 2
          %s332 = smul.addr %s331, 8
          %s333 = scalar_lea.hbm %s3, %s332
          %s334 = sshll.u32 %s325, 4
          %s335 = int_to_ptr.vmem [resolvable:$true] %s334
          %s336 = sshll.u32 %s333, 4
          %s337 = int_to_ptr.hbm [resolvable:$true] %s336
          %342 = dma.vmem_to_hbm [thread:$0]  %s335, 256, %s337, %s322, 128, 128, 8
        $region48: #{tpu_custom_call.1} parent=31 // pred_fallthru
          _
      $region32: #{tpu_custom_call.1} parent=5 // pred_fallthru
        _
      %p343 = scmp.le.s32.totalorder 2, %s18
      // Predicated region
      $region49: #{tpu_custom_call.1} parent=5 // pred_check
        %p344 = pneg %p343
      $region50: #{tpu_custom_call.1} parent=5 // pred_check_branch
        %346 = sbr.rel (%p344) target = $region52
      $region51: #{tpu_custom_call.1} parent=5 // pred_region
        %s347 = ssub.s32 %s18, 2
        // Predicated region
        $region53: #{tpu_custom_call.1} parent=51 // pred_check
          %p348 = pneg %p125
        $region54: #{tpu_custom_call.1} parent=51 // pred_check_branch
          %350 = sbr.rel (%p348) target = $region56
        $region55: #{tpu_custom_call.1} parent=51 // pred_region
          %s351 = sand.u32 %s110, 1
          %s352 = scalar_lea.sflag [#allocation4], %s351
          %s353 = sand.u32 %s110, 1
          %s354 = smul.addr %s353, 16
          %s355 = scalar_lea.vmem [#allocation8], %s354
          %357 = dma.done %s352, 256
        $region56: #{tpu_custom_call.1} parent=51 // pred_fallthru
          _
      $region52: #{tpu_custom_call.1} parent=5 // pred_fallthru
        _
    $region6: #{tpu_custom_call.1} parent=1 // loop_footer
      %s22 = sadd.s32 1, %s18
    $region7: #{tpu_custom_call.1} parent=1 // loop_footer_branch
      %17 = sbr.rel target = $region3
    $region8: #{tpu_custom_call.1} parent=1 // loop_exit
      _
    %358 = vsyncpa [#allocation3], 1
    %s359 = scalar_lea.sflag [#allocation3], 1
    %360 = vsyncpa %s359, 1
    %361 = vsyncpa [#allocation6], 1
    %s362 = scalar_lea.sflag [#allocation6], 1
    %363 = vsyncpa %s362, 1
    %364 = vsyncpa [#allocation4], 1
    %s365 = scalar_lea.sflag [#allocation4], 1
    %366 = vsyncpa %s365, 1

</llo_original>
